<compile_context>
chip_gen: v7x
topology: tpu7x:2x2x1
jax: 0.10.0
libtpu: 0.0.40
codegen_flags: <defaults>
</compile_context>

<pallas_src>
import jax
import jax.numpy as jnp
import numpy as np
from jax.experimental import pallas as pl
from jax.experimental.pallas import tpu as pltpu

# ---- small, forward-consistent sizes ---------------------------------------
H = 64            # h_size (module uses 256; small-shape variant)
X = 64            # x_size
NUM_CLASSES = 8
NUM_VOCABS = 100
N = 15            # complete binary tree: 8 leaves + 4 + 2 + 1
N_SLAB = 32       # level-major slab: 8 rows per level (pad rows unused)
OUT_PAD = 128     # lane-dense padded logits width

# original node id -> slab row (leaves 0..7 | level1 8..11 | level2 16,17 | root 24)
SLAB_ROWS = np.array([0, 1, 2, 3, 4, 5, 6, 7,
                      8, 9, 10, 11,
                      16, 17,
                      24], dtype=np.int32)

# internal levels as (prev_level_slab_offset, num_nodes, this_level_slab_offset)
INTERNAL_LEVELS = ((0, 4, 8), (8, 2, 16), (16, 1, 24))


# ---- fused Pallas kernel -----------------------------------------------------
def _tree_lstm_kernel(x_ref, c0_ref, wiou_ref, uiou_ref, biou_ref,
                      uf_ref, bf_ref, lw_ref, lb_ref,
                      out_ref, h_slab, c_slab):
    f32 = jnp.float32

    def dot(a, b):
        return jnp.dot(a, b, preferred_element_type=f32)

    # Zero the slabs so pad rows feeding the classifier are deterministic/finite.
    h_slab[...] = jnp.zeros_like(h_slab)
    c_slab[...] = jnp.zeros_like(c_slab)

    b_iou = biou_ref[...]          # (1, 3H)
    b_f = bf_ref[...]              # (1, 2H)

    def cell(iou, c_acc):
        # iou: (n, 3H); c_acc: (n, H).  One 128-lane sigmoid covers i and o.
        io = jax.nn.sigmoid(iou[:, :2 * H])
        i = io[:, :H]
        o = io[:, H:]
        u = jnp.tanh(iou[:, 2 * H:])
        c = i * u + c_acc
        h = o * jnp.tanh(c)
        return h, c

    # ---- level 0: leaves (8 nodes -> slab rows 0..7) -------------------------
    iou = dot(x_ref[...], wiou_ref[...]) + b_iou          # (8, 3H)
    h, c = cell(iou, c0_ref[...])
    h_slab[pl.ds(0, 8), :] = h
    c_slab[pl.ds(0, 8), :] = c

    # ---- internal levels: static unrolled loop -------------------------------
    for prev_off, n, off in INTERNAL_LEVELS:
        # sibling pairs: even rows = left children, odd rows = right children
        h_l = h_slab[pl.ds(prev_off, n, stride=2), :]      # (n, H)
        h_r = h_slab[pl.ds(prev_off + 1, n, stride=2), :]
        c_l = c_slab[pl.ds(prev_off, n, stride=2), :]
        c_r = c_slab[pl.ds(prev_off + 1, n, stride=2), :]

        h_cat = jnp.concatenate([h_l, h_r], axis=1)        # (n, 2H): K=128 on MXU
        c_cat = jnp.concatenate([c_l, c_r], axis=1)

        f = jax.nn.sigmoid(dot(h_cat, uf_ref[...]) + b_f)  # (n, 2H), single dot
        fc = f * c_cat
        c_acc = fc[:, :H] + fc[:, H:]                      # sum over the 2 children

        iou = dot(h_cat, uiou_ref[...]) + b_iou            # (n, 3H), single dot
        h, c = cell(iou, c_acc)

        h_slab[pl.ds(off, n), :] = h
        c_slab[pl.ds(off, n), :] = c

    # ---- fused classifier on all nodes (lane-dense 128-wide store) -----------
    out_ref[...] = dot(h_slab[...], lw_ref[...]) + lb_ref[...]


# ---- model -------------------------------------------------------------------
def init_params(key):
    ks = jax.random.split(key, 7)
    s = 0.1
    return {
        "emb": s * jax.random.normal(ks[0], (NUM_VOCABS, X), jnp.float32),
        "W_iou": s * jax.random.normal(ks[1], (X, 3 * H), jnp.float32),      # W_iou.weight.T
        "U_iou": s * jax.random.normal(ks[2], (2 * H, 3 * H), jnp.float32),  # U_iou.weight.T
        "b_iou": jnp.zeros((1, 3 * H), jnp.float32),
        "U_f_w": s * jax.random.normal(ks[3], (2 * H, 2 * H), jnp.float32),  # U_f.weight.T
        "U_f_b": s * jax.random.normal(ks[4], (1, 2 * H), jnp.float32),
        "lin_w": s * jax.random.normal(ks[5], (H, NUM_CLASSES), jnp.float32),
        "lin_b": s * jax.random.normal(ks[6], (1, NUM_CLASSES), jnp.float32),
    }


def tree_lstm_forward(params, wordid, mask, h0, c0):
    # h0 is never read: apply_node_func overwrites every node's h before it is
    # consumed (prop_nodes_topo visits leaves first). Kept for signature parity.
    del h0
    # TODO(synk): nn.Dropout is identity (eval-mode forward).

    leaf_mask = mask[:8]
    leaf_maskf = leaf_mask.astype(jnp.float32)[:, None]
    # mask folded into the embeddings: (emb*mask) @ W == (emb @ W) * mask.
    x_leaf = params["emb"][wordid[:8] * leaf_mask] * leaf_maskf      # (8, X)
    c0_leaf = c0[:8]                                                 # (8, H)

    # lane-dense (128-wide) classifier weights / bias.
    lw_pad = jnp.zeros((H, OUT_PAD), jnp.float32).at[:, :NUM_CLASSES].set(params["lin_w"])
    lb_pad = jnp.zeros((1, OUT_PAD), jnp.float32).at[:, :NUM_CLASSES].set(params["lin_b"])

    vmem_specs = [pl.BlockSpec(memory_space=pltpu.MemorySpace.VMEM) for _ in range(9)]

    out_pad = pl.pallas_call(
        _tree_lstm_kernel,
        out_shape=jax.ShapeDtypeStruct((N_SLAB, OUT_PAD), jnp.float32),
        in_specs=vmem_specs,
        out_specs=pl.BlockSpec(memory_space=pltpu.MemorySpace.VMEM),
        scratch_shapes=[
            pltpu.VMEM((N_SLAB, H), jnp.float32),   # h slab (level-major)
            pltpu.VMEM((N_SLAB, H), jnp.float32),   # c slab (level-major)
        ],
    )(x_leaf, c0_leaf,
      params["W_iou"], params["U_iou"], params["b_iou"],
      params["U_f_w"], params["U_f_b"],
      lw_pad, lb_pad)

    # slab rows -> original node order; strip lane padding.
    return out_pad[SLAB_ROWS, :NUM_CLASSES]


# ---- pure-JAX reference (node-by-node, mirrors the PyTorch/DGL semantics) ----
def reference_forward(params, wordid, mask, h0, c0):
    del h0
    children = {8: (0, 1), 9: (2, 3), 10: (4, 5), 11: (6, 7),
                12: (8, 9), 13: (10, 11), 14: (12, 13)}
    emb = params["emb"][wordid * mask]
    iou_x = (emb @ params["W_iou"]) * mask.astype(jnp.float32)[:, None]
    h = [None] * N
    c = [None] * N
    for n in range(N):  # topological order (children have smaller indices)
        if n not in children:
            iou = iou_x[n] + params["b_iou"][0]
            c_acc = c0[n]
        else:
            l, r = children[n]
            h_cat = jnp.concatenate([h[l], h[r]])
            f = jax.nn.sigmoid(h_cat @ params["U_f_w"] + params["U_f_b"][0])
            c_acc = f[:H] * c[l] + f[H:] * c[r]
            # DGL reduce_func overwrites 'iou' for internal nodes with U_iou(h_cat).
            iou = h_cat @ params["U_iou"] + params["b_iou"][0]
        i = jax.nn.sigmoid(iou[:H])
        o = jax.nn.sigmoid(iou[H:2 * H])
        u = jnp.tanh(iou[2 * H:])
        cc = i * u + c_acc
        h[n] = o * jnp.tanh(cc)
        c[n] = cc
    hmat = jnp.stack(h)
    return hmat @ params["lin_w"] + params["lin_b"][0]


# ---- driver ------------------------------------------------------------------
if __name__ == "__main__":
    key = jax.random.PRNGKey(0)
    kp, kw, kc = jax.random.split(key, 3)
    params = init_params(kp)

    # SST-style batch: leaves carry words (mask=1), internal nodes mask=0.
    wordid = jax.random.randint(kw, (N,), 0, NUM_VOCABS, dtype=jnp.int32)
    mask = jnp.asarray([1] * 8 + [0] * 7, jnp.int32)     # (N,)
    h0 = jnp.zeros((N, H), jnp.float32)
    c0 = 0.1 * jax.random.normal(kc, (N, H), jnp.float32)

    forward = jax.jit(tree_lstm_forward)
    logits = forward(params, wordid, mask, h0, c0)
    logits = jax.block_until_ready(logits)

    ref = reference_forward(params, wordid, mask, h0, c0)
    np.testing.assert_allclose(np.asarray(logits), np.asarray(ref),
                               rtol=1e-5, atol=1e-5)
    print("KERNEL_OK")
</pallas_src>

<mosaic_0001>
module attributes {stable_mosaic.version = 11 : i64} {
  func.func @_tree_lstm_kernel(%arg0: memref<8x64xf32, #tpu.memory_space<vmem>>, %arg1: memref<8x64xf32, #tpu.memory_space<vmem>>, %arg2: memref<64x192xf32, #tpu.memory_space<vmem>>, %arg3: memref<128x192xf32, #tpu.memory_space<vmem>>, %arg4: memref<1x192xf32, #tpu.memory_space<vmem>>, %arg5: memref<128x128xf32, #tpu.memory_space<vmem>>, %arg6: memref<1x128xf32, #tpu.memory_space<vmem>>, %arg7: memref<64x128xf32, #tpu.memory_space<vmem>>, %arg8: memref<1x128xf32, #tpu.memory_space<vmem>>, %arg9: memref<32x128xf32, #tpu.memory_space<vmem>>, %arg10: memref<32x64xf32, #tpu.memory_space<vmem>>, %arg11: memref<32x64xf32, #tpu.memory_space<vmem>>) attributes {dimension_semantics = [], scalar_prefetch = 0 : i64, scratch_operands = 2 : i64, tpu.core_type = #tpu.core_type<tc>} {
    %cst = arith.constant 0.000000e+00 : f32
    %0 = vector.broadcast %cst : f32 to vector<32x64xf32>
    %c0 = arith.constant 0 : index
    %c0_0 = arith.constant 0 : index
    %1 = vector.load %arg10[%c0, %c0_0] : memref<32x64xf32, #tpu.memory_space<vmem>>, vector<32x64xf32>
    tpu.vector_store %arg10[%c0, %c0_0], %0 {strides = array<i32>} : memref<32x64xf32, #tpu.memory_space<vmem>>, vector<32x64xf32>,
    %cst_1 = arith.constant 0.000000e+00 : f32
    %2 = vector.broadcast %cst_1 : f32 to vector<32x64xf32>
    %c0_2 = arith.constant 0 : index
    %c0_3 = arith.constant 0 : index
    %3 = vector.load %arg11[%c0_2, %c0_3] : memref<32x64xf32, #tpu.memory_space<vmem>>, vector<32x64xf32>
    tpu.vector_store %arg11[%c0_2, %c0_3], %2 {strides = array<i32>} : memref<32x64xf32, #tpu.memory_space<vmem>>, vector<32x64xf32>,
    %c0_4 = arith.constant 0 : index
    %c0_5 = arith.constant 0 : index
    %4 = vector.load %arg4[%c0_4, %c0_5] : memref<1x192xf32, #tpu.memory_space<vmem>>, vector<1x192xf32>
    %c0_6 = arith.constant 0 : index
    %c0_7 = arith.constant 0 : index
    %5 = vector.load %arg6[%c0_6, %c0_7] : memref<1x128xf32, #tpu.memory_space<vmem>>, vector<1x128xf32>
    %c0_8 = arith.constant 0 : index
    %c0_9 = arith.constant 0 : index
    %6 = vector.load %arg0[%c0_8, %c0_9] : memref<8x64xf32, #tpu.memory_space<vmem>>, vector<8x64xf32>
    %c0_10 = arith.constant 0 : index
    %c0_11 = arith.constant 0 : index
    %7 = vector.load %arg2[%c0_10, %c0_11] : memref<64x192xf32, #tpu.memory_space<vmem>>, vector<64x192xf32>
    %cst_12 = arith.constant dense<0.000000e+00> : vector<8x192xf32>
    %8 = tpu.matmul %6, %7, %cst_12 {dimension_numbers = #tpu.dot_dimension_numbers<[1], [0], [0], [1], [0, 0, 1, 1], [], []>} : vector<8x64xf32>, vector<64x192xf32>, vector<8x192xf32> -> vector<8x192xf32>
    %9 = vector.broadcast %4 : vector<1x192xf32> to vector<8x192xf32>
    %10 = arith.addf %8, %9 : vector<8x192xf32>
    %c0_13 = arith.constant 0 : index
    %c0_14 = arith.constant 0 : index
    %11 = vector.load %arg1[%c0_13, %c0_14] : memref<8x64xf32, #tpu.memory_space<vmem>>, vector<8x64xf32>
    %12 = vector.extract_strided_slice %10 {offsets = [0, 0], sizes = [8, 128], strides = [1, 1]} : vector<8x192xf32> to vector<8x128xf32>
    %13 = arith.negf %12 : vector<8x128xf32>
    %14 = math.exp %13 : vector<8x128xf32>
    %cst_15 = arith.constant 1.000000e+00 : f32
    %15 = vector.broadcast %cst_15 : f32 to vector<8x128xf32>
    %16 = arith.addf %15, %14 : vector<8x128xf32>
    %17 = arith.divf %15, %16 : vector<8x128xf32>
    %18 = vector.extract_strided_slice %17 {offsets = [0, 0], sizes = [8, 64], strides = [1, 1]} : vector<8x128xf32> to vector<8x64xf32>
    %19 = vector.extract_strided_slice %17 {offsets = [0, 64], sizes = [8, 64], strides = [1, 1]} : vector<8x128xf32> to vector<8x64xf32>
    %20 = vector.extract_strided_slice %10 {offsets = [0, 128], sizes = [8, 64], strides = [1, 1]} : vector<8x192xf32> to vector<8x64xf32>
    %21 = math.tanh %20 : vector<8x64xf32>
    %22 = arith.mulf %18, %21 : vector<8x64xf32>
    %23 = arith.addf %22, %11 : vector<8x64xf32>
    %24 = math.tanh %23 : vector<8x64xf32>
    %25 = arith.mulf %19, %24 : vector<8x64xf32>
    %c0_16 = arith.constant 0 : index
    %c0_17 = arith.constant 0 : index
    %26 = vector.load %arg10[%c0_16, %c0_17] : memref<32x64xf32, #tpu.memory_space<vmem>>, vector<8x64xf32>
    tpu.vector_store %arg10[%c0_16, %c0_17], %25 {strides = array<i32>} : memref<32x64xf32, #tpu.memory_space<vmem>>, vector<8x64xf32>,
    %c0_18 = arith.constant 0 : index
    %c0_19 = arith.constant 0 : index
    %27 = vector.load %arg11[%c0_18, %c0_19] : memref<32x64xf32, #tpu.memory_space<vmem>>, vector<8x64xf32>
    tpu.vector_store %arg11[%c0_18, %c0_19], %23 {strides = array<i32>} : memref<32x64xf32, #tpu.memory_space<vmem>>, vector<8x64xf32>,
    %c0_20 = arith.constant 0 : index
    %c0_21 = arith.constant 0 : index
    %28 = tpu.strided_load %arg10[%c0_20, %c0_21] {strides = array<i32: 2, 1>} : memref<32x64xf32, #tpu.memory_space<vmem>>, vector<4x64xf32>
    %c1 = arith.constant 1 : index
    %c0_22 = arith.constant 0 : index
    %29 = tpu.strided_load %arg10[%c1, %c0_22] {strides = array<i32: 2, 1>} : memref<32x64xf32, #tpu.memory_space<vmem>>, vector<4x64xf32>
    %c0_23 = arith.constant 0 : index
    %c0_24 = arith.constant 0 : index
    %30 = tpu.strided_load %arg11[%c0_23, %c0_24] {strides = array<i32: 2, 1>} : memref<32x64xf32, #tpu.memory_space<vmem>>, vector<4x64xf32>
    %c1_25 = arith.constant 1 : index
    %c0_26 = arith.constant 0 : index
    %31 = tpu.strided_load %arg11[%c1_25, %c0_26] {strides = array<i32: 2, 1>} : memref<32x64xf32, #tpu.memory_space<vmem>>, vector<4x64xf32>
    %32 = tpu.concatenate %28, %29 in 1 : vector<4x64xf32>, vector<4x64xf32> -> vector<4x128xf32>
    %33 = tpu.concatenate %30, %31 in 1 : vector<4x64xf32>, vector<4x64xf32> -> vector<4x128xf32>
    %c0_27 = arith.constant 0 : index
    %c0_28 = arith.constant 0 : index
    %34 = vector.load %arg5[%c0_27, %c0_28] : memref<128x128xf32, #tpu.memory_space<vmem>>, vector<128x128xf32>
    %cst_29 = arith.constant dense<0.000000e+00> : vector<4x128xf32>
    %35 = tpu.matmul %32, %34, %cst_29 {dimension_numbers = #tpu.dot_dimension_numbers<[1], [0], [0], [1], [0, 0, 1, 1], [], []>} : vector<4x128xf32>, vector<128x128xf32>, vector<4x128xf32> -> vector<4x128xf32>
    %36 = vector.broadcast %5 : vector<1x128xf32> to vector<4x128xf32>
    %37 = arith.addf %35, %36 : vector<4x128xf32>
    %38 = arith.negf %37 : vector<4x128xf32>
    %39 = math.exp %38 : vector<4x128xf32>
    %cst_30 = arith.constant 1.000000e+00 : f32
    %40 = vector.broadcast %cst_30 : f32 to vector<4x128xf32>
    %41 = arith.addf %40, %39 : vector<4x128xf32>
    %42 = arith.divf %40, %41 : vector<4x128xf32>
    %43 = arith.mulf %42, %33 : vector<4x128xf32>
    %44 = vector.extract_strided_slice %43 {offsets = [0, 0], sizes = [4, 64], strides = [1, 1]} : vector<4x128xf32> to vector<4x64xf32>
    %45 = vector.extract_strided_slice %43 {offsets = [0, 64], sizes = [4, 64], strides = [1, 1]} : vector<4x128xf32> to vector<4x64xf32>
    %46 = arith.addf %44, %45 : vector<4x64xf32>
    %c0_31 = arith.constant 0 : index
    %c0_32 = arith.constant 0 : index
    %47 = vector.load %arg3[%c0_31, %c0_32] : memref<128x192xf32, #tpu.memory_space<vmem>>, vector<128x192xf32>
    %cst_33 = arith.constant dense<0.000000e+00> : vector<4x192xf32>
    %48 = tpu.matmul %32, %47, %cst_33 {dimension_numbers = #tpu.dot_dimension_numbers<[1], [0], [0], [1], [0, 0, 1, 1], [], []>} : vector<4x128xf32>, vector<128x192xf32>, vector<4x192xf32> -> vector<4x192xf32>
    %49 = vector.broadcast %4 : vector<1x192xf32> to vector<4x192xf32>
    %50 = arith.addf %48, %49 : vector<4x192xf32>
    %51 = vector.extract_strided_slice %50 {offsets = [0, 0], sizes = [4, 128], strides = [1, 1]} : vector<4x192xf32> to vector<4x128xf32>
    %52 = arith.negf %51 : vector<4x128xf32>
    %53 = math.exp %52 : vector<4x128xf32>
    %cst_34 = arith.constant 1.000000e+00 : f32
    %54 = vector.broadcast %cst_34 : f32 to vector<4x128xf32>
    %55 = arith.addf %54, %53 : vector<4x128xf32>
    %56 = arith.divf %54, %55 : vector<4x128xf32>
    %57 = vector.extract_strided_slice %56 {offsets = [0, 0], sizes = [4, 64], strides = [1, 1]} : vector<4x128xf32> to vector<4x64xf32>
    %58 = vector.extract_strided_slice %56 {offsets = [0, 64], sizes = [4, 64], strides = [1, 1]} : vector<4x128xf32> to vector<4x64xf32>
    %59 = vector.extract_strided_slice %50 {offsets = [0, 128], sizes = [4, 64], strides = [1, 1]} : vector<4x192xf32> to vector<4x64xf32>
    %60 = math.tanh %59 : vector<4x64xf32>
    %61 = arith.mulf %57, %60 : vector<4x64xf32>
    %62 = arith.addf %61, %46 : vector<4x64xf32>
    %63 = math.tanh %62 : vector<4x64xf32>
    %64 = arith.mulf %58, %63 : vector<4x64xf32>
    %c8 = arith.constant 8 : index
    %c0_35 = arith.constant 0 : index
    %65 = vector.load %arg10[%c8, %c0_35] : memref<32x64xf32, #tpu.memory_space<vmem>>, vector<4x64xf32>
    tpu.vector_store %arg10[%c8, %c0_35], %64 {strides = array<i32>} : memref<32x64xf32, #tpu.memory_space<vmem>>, vector<4x64xf32>,
    %c8_36 = arith.constant 8 : index
    %c0_37 = arith.constant 0 : index
    %66 = vector.load %arg11[%c8_36, %c0_37] : memref<32x64xf32, #tpu.memory_space<vmem>>, vector<4x64xf32>
    tpu.vector_store %arg11[%c8_36, %c0_37], %62 {strides = array<i32>} : memref<32x64xf32, #tpu.memory_space<vmem>>, vector<4x64xf32>,
    %c8_38 = arith.constant 8 : index
    %c0_39 = arith.constant 0 : index
    %67 = tpu.strided_load %arg10[%c8_38, %c0_39] {strides = array<i32: 2, 1>} : memref<32x64xf32, #tpu.memory_space<vmem>>, vector<2x64xf32>
    %c9 = arith.constant 9 : index
    %c0_40 = arith.constant 0 : index
    %68 = tpu.strided_load %arg10[%c9, %c0_40] {strides = array<i32: 2, 1>} : memref<32x64xf32, #tpu.memory_space<vmem>>, vector<2x64xf32>
    %c8_41 = arith.constant 8 : index
    %c0_42 = arith.constant 0 : index
    %69 = tpu.strided_load %arg11[%c8_41, %c0_42] {strides = array<i32: 2, 1>} : memref<32x64xf32, #tpu.memory_space<vmem>>, vector<2x64xf32>
    %c9_43 = arith.constant 9 : index
    %c0_44 = arith.constant 0 : index
    %70 = tpu.strided_load %arg11[%c9_43, %c0_44] {strides = array<i32: 2, 1>} : memref<32x64xf32, #tpu.memory_space<vmem>>, vector<2x64xf32>
    %71 = tpu.concatenate %67, %68 in 1 : vector<2x64xf32>, vector<2x64xf32> -> vector<2x128xf32>
    %72 = tpu.concatenate %69, %70 in 1 : vector<2x64xf32>, vector<2x64xf32> -> vector<2x128xf32>
    %c0_45 = arith.constant 0 : index
    %c0_46 = arith.constant 0 : index
    %73 = vector.load %arg5[%c0_45, %c0_46] : memref<128x128xf32, #tpu.memory_space<vmem>>, vector<128x128xf32>
    %cst_47 = arith.constant dense<0.000000e+00> : vector<2x128xf32>
    %74 = tpu.matmul %71, %73, %cst_47 {dimension_numbers = #tpu.dot_dimension_numbers<[1], [0], [0], [1], [0, 0, 1, 1], [], []>} : vector<2x128xf32>, vector<128x128xf32>, vector<2x128xf32> -> vector<2x128xf32>
    %75 = vector.broadcast %5 : vector<1x128xf32> to vector<2x128xf32>
    %76 = arith.addf %74, %75 : vector<2x128xf32>
    %77 = arith.negf %76 : vector<2x128xf32>
    %78 = math.exp %77 : vector<2x128xf32>
    %cst_48 = arith.constant 1.000000e+00 : f32
    %79 = vector.broadcast %cst_48 : f32 to vector<2x128xf32>
    %80 = arith.addf %79, %78 : vector<2x128xf32>
    %81 = arith.divf %79, %80 : vector<2x128xf32>
    %82 = arith.mulf %81, %72 : vector<2x128xf32>
    %83 = vector.extract_strided_slice %82 {offsets = [0, 0], sizes = [2, 64], strides = [1, 1]} : vector<2x128xf32> to vector<2x64xf32>
    %84 = vector.extract_strided_slice %82 {offsets = [0, 64], sizes = [2, 64], strides = [1, 1]} : vector<2x128xf32> to vector<2x64xf32>
    %85 = arith.addf %83, %84 : vector<2x64xf32>
    %c0_49 = arith.constant 0 : index
    %c0_50 = arith.constant 0 : index
    %86 = vector.load %arg3[%c0_49, %c0_50] : memref<128x192xf32, #tpu.memory_space<vmem>>, vector<128x192xf32>
    %cst_51 = arith.constant dense<0.000000e+00> : vector<2x192xf32>
    %87 = tpu.matmul %71, %86, %cst_51 {dimension_numbers = #tpu.dot_dimension_numbers<[1], [0], [0], [1], [0, 0, 1, 1], [], []>} : vector<2x128xf32>, vector<128x192xf32>, vector<2x192xf32> -> vector<2x192xf32>
    %88 = vector.broadcast %4 : vector<1x192xf32> to vector<2x192xf32>
    %89 = arith.addf %87, %88 : vector<2x192xf32>
    %90 = vector.extract_strided_slice %89 {offsets = [0, 0], sizes = [2, 128], strides = [1, 1]} : vector<2x192xf32> to vector<2x128xf32>
    %91 = arith.negf %90 : vector<2x128xf32>
    %92 = math.exp %91 : vector<2x128xf32>
    %cst_52 = arith.constant 1.000000e+00 : f32
    %93 = vector.broadcast %cst_52 : f32 to vector<2x128xf32>
    %94 = arith.addf %93, %92 : vector<2x128xf32>
    %95 = arith.divf %93, %94 : vector<2x128xf32>
    %96 = vector.extract_strided_slice %95 {offsets = [0, 0], sizes = [2, 64], strides = [1, 1]} : vector<2x128xf32> to vector<2x64xf32>
    %97 = vector.extract_strided_slice %95 {offsets = [0, 64], sizes = [2, 64], strides = [1, 1]} : vector<2x128xf32> to vector<2x64xf32>
    %98 = vector.extract_strided_slice %89 {offsets = [0, 128], sizes = [2, 64], strides = [1, 1]} : vector<2x192xf32> to vector<2x64xf32>
    %99 = math.tanh %98 : vector<2x64xf32>
    %100 = arith.mulf %96, %99 : vector<2x64xf32>
    %101 = arith.addf %100, %85 : vector<2x64xf32>
    %102 = math.tanh %101 : vector<2x64xf32>
    %103 = arith.mulf %97, %102 : vector<2x64xf32>
    %c16 = arith.constant 16 : index
    %c0_53 = arith.constant 0 : index
    %104 = vector.load %arg10[%c16, %c0_53] : memref<32x64xf32, #tpu.memory_space<vmem>>, vector<2x64xf32>
    tpu.vector_store %arg10[%c16, %c0_53], %103 {strides = array<i32>} : memref<32x64xf32, #tpu.memory_space<vmem>>, vector<2x64xf32>,
    %c16_54 = arith.constant 16 : index
    %c0_55 = arith.constant 0 : index
    %105 = vector.load %arg11[%c16_54, %c0_55] : memref<32x64xf32, #tpu.memory_space<vmem>>, vector<2x64xf32>
    tpu.vector_store %arg11[%c16_54, %c0_55], %101 {strides = array<i32>} : memref<32x64xf32, #tpu.memory_space<vmem>>, vector<2x64xf32>,
    %c16_56 = arith.constant 16 : index
    %c0_57 = arith.constant 0 : index
    %106 = tpu.strided_load %arg10[%c16_56, %c0_57] {strides = array<i32: 2, 1>} : memref<32x64xf32, #tpu.memory_space<vmem>>, vector<1x64xf32>
    %c17 = arith.constant 17 : index
    %c0_58 = arith.constant 0 : index
    %107 = tpu.strided_load %arg10[%c17, %c0_58] {strides = array<i32: 2, 1>} : memref<32x64xf32, #tpu.memory_space<vmem>>, vector<1x64xf32>
    %c16_59 = arith.constant 16 : index
    %c0_60 = arith.constant 0 : index
    %108 = tpu.strided_load %arg11[%c16_59, %c0_60] {strides = array<i32: 2, 1>} : memref<32x64xf32, #tpu.memory_space<vmem>>, vector<1x64xf32>
    %c17_61 = arith.constant 17 : index
    %c0_62 = arith.constant 0 : index
    %109 = tpu.strided_load %arg11[%c17_61, %c0_62] {strides = array<i32: 2, 1>} : memref<32x64xf32, #tpu.memory_space<vmem>>, vector<1x64xf32>
    %110 = tpu.concatenate %106, %107 in 1 : vector<1x64xf32>, vector<1x64xf32> -> vector<1x128xf32>
    %111 = tpu.concatenate %108, %109 in 1 : vector<1x64xf32>, vector<1x64xf32> -> vector<1x128xf32>
    %c0_63 = arith.constant 0 : index
    %c0_64 = arith.constant 0 : index
    %112 = vector.load %arg5[%c0_63, %c0_64] : memref<128x128xf32, #tpu.memory_space<vmem>>, vector<128x128xf32>
    %cst_65 = arith.constant dense<0.000000e+00> : vector<1x128xf32>
    %113 = tpu.matmul %110, %112, %cst_65 {dimension_numbers = #tpu.dot_dimension_numbers<[1], [0], [0], [1], [0, 0, 1, 1], [], []>} : vector<1x128xf32>, vector<128x128xf32>, vector<1x128xf32> -> vector<1x128xf32>
    %114 = arith.addf %113, %5 : vector<1x128xf32>
    %115 = arith.negf %114 : vector<1x128xf32>
    %116 = math.exp %115 : vector<1x128xf32>
    %cst_66 = arith.constant 1.000000e+00 : f32
    %117 = vector.broadcast %cst_66 : f32 to vector<1x128xf32>
    %118 = arith.addf %117, %116 : vector<1x128xf32>
    %119 = arith.divf %117, %118 : vector<1x128xf32>
    %120 = arith.mulf %119, %111 : vector<1x128xf32>
    %121 = vector.extract_strided_slice %120 {offsets = [0, 0], sizes = [1, 64], strides = [1, 1]} : vector<1x128xf32> to vector<1x64xf32>
    %122 = vector.extract_strided_slice %120 {offsets = [0, 64], sizes = [1, 64], strides = [1, 1]} : vector<1x128xf32> to vector<1x64xf32>
    %123 = arith.addf %121, %122 : vector<1x64xf32>
    %c0_67 = arith.constant 0 : index
    %c0_68 = arith.constant 0 : index
    %124 = vector.load %arg3[%c0_67, %c0_68] : memref<128x192xf32, #tpu.memory_space<vmem>>, vector<128x192xf32>
    %cst_69 = arith.constant dense<0.000000e+00> : vector<1x192xf32>
    %125 = tpu.matmul %110, %124, %cst_69 {dimension_numbers = #tpu.dot_dimension_numbers<[1], [0], [0], [1], [0, 0, 1, 1], [], []>} : vector<1x128xf32>, vector<128x192xf32>, vector<1x192xf32> -> vector<1x192xf32>
    %126 = arith.addf %125, %4 : vector<1x192xf32>
    %127 = vector.extract_strided_slice %126 {offsets = [0, 0], sizes = [1, 128], strides = [1, 1]} : vector<1x192xf32> to vector<1x128xf32>
    %128 = arith.negf %127 : vector<1x128xf32>
    %129 = math.exp %128 : vector<1x128xf32>
    %cst_70 = arith.constant 1.000000e+00 : f32
    %130 = vector.broadcast %cst_70 : f32 to vector<1x128xf32>
    %131 = arith.addf %130, %129 : vector<1x128xf32>
    %132 = arith.divf %130, %131 : vector<1x128xf32>
    %133 = vector.extract_strided_slice %132 {offsets = [0, 0], sizes = [1, 64], strides = [1, 1]} : vector<1x128xf32> to vector<1x64xf32>
    %134 = vector.extract_strided_slice %132 {offsets = [0, 64], sizes = [1, 64], strides = [1, 1]} : vector<1x128xf32> to vector<1x64xf32>
    %135 = vector.extract_strided_slice %126 {offsets = [0, 128], sizes = [1, 64], strides = [1, 1]} : vector<1x192xf32> to vector<1x64xf32>
    %136 = math.tanh %135 : vector<1x64xf32>
    %137 = arith.mulf %133, %136 : vector<1x64xf32>
    %138 = arith.addf %137, %123 : vector<1x64xf32>
    %139 = math.tanh %138 : vector<1x64xf32>
    %140 = arith.mulf %134, %139 : vector<1x64xf32>
    %c24 = arith.constant 24 : index
    %c0_71 = arith.constant 0 : index
    %141 = vector.load %arg10[%c24, %c0_71] : memref<32x64xf32, #tpu.memory_space<vmem>>, vector<1x64xf32>
    tpu.vector_store %arg10[%c24, %c0_71], %140 {strides = array<i32>} : memref<32x64xf32, #tpu.memory_space<vmem>>, vector<1x64xf32>,
    %c24_72 = arith.constant 24 : index
    %c0_73 = arith.constant 0 : index
    %142 = vector.load %arg11[%c24_72, %c0_73] : memref<32x64xf32, #tpu.memory_space<vmem>>, vector<1x64xf32>
    tpu.vector_store %arg11[%c24_72, %c0_73], %138 {strides = array<i32>} : memref<32x64xf32, #tpu.memory_space<vmem>>, vector<1x64xf32>,
    %c0_74 = arith.constant 0 : index
    %c0_75 = arith.constant 0 : index
    %143 = vector.load %arg10[%c0_74, %c0_75] : memref<32x64xf32, #tpu.memory_space<vmem>>, vector<32x64xf32>
    %c0_76 = arith.constant 0 : index
    %c0_77 = arith.constant 0 : index
    %144 = vector.load %arg7[%c0_76, %c0_77] : memref<64x128xf32, #tpu.memory_space<vmem>>, vector<64x128xf32>
    %cst_78 = arith.constant dense<0.000000e+00> : vector<32x128xf32>
    %145 = tpu.matmul %143, %144, %cst_78 {dimension_numbers = #tpu.dot_dimension_numbers<[1], [0], [0], [1], [0, 0, 1, 1], [], []>} : vector<32x64xf32>, vector<64x128xf32>, vector<32x128xf32> -> vector<32x128xf32>
    %c0_79 = arith.constant 0 : index
    %c0_80 = arith.constant 0 : index
    %146 = vector.load %arg8[%c0_79, %c0_80] : memref<1x128xf32, #tpu.memory_space<vmem>>, vector<1x128xf32>
    %147 = vector.broadcast %146 : vector<1x128xf32> to vector<32x128xf32>
    %148 = arith.addf %145, %147 : vector<32x128xf32>
    %c0_81 = arith.constant 0 : index
    %c0_82 = arith.constant 0 : index
    %149 = vector.load %arg9[%c0_81, %c0_82] : memref<32x128xf32, #tpu.memory_space<vmem>>, vector<32x128xf32>
    tpu.vector_store %arg9[%c0_81, %c0_82], %148 {strides = array<i32>} : memref<32x128xf32, #tpu.memory_space<vmem>>, vector<32x128xf32>,
    return
  }
}

</mosaic_0001>

<llo_original>
// kernel: custom-call.2
$region0: #{custom-call.2}
  %s0 = inlined_call_operand.vmem [shape: f32[15,8], index: 0, kind: output, shape index: {}]

// kernel: tree_lstm_forward.1
$region0: #{tree_lstm_forward.1}
  #allocation0 [shape = 'u32[]', space=smem, size = 0x4, offset = 0x4, fixed_abs, tag = 'smem constant byte address 0x4 - core index']
  #allocation1 [shape = 'u32[144,128]{1,0:T(1,128)}', space=vmem, size = 0x12000, scoped, tag = 'internal scratch']
  #allocation2 [shape = 'f32[32,64]{1,0:T(8,128)}', space=vmem, size = 0x4000, scoped, tag = 'scratch operand']
  #allocation3 [shape = 'f32[32,64]{1,0:T(8,128)}', space=vmem, size = 0x4000, scoped, tag = 'scratch operand']
  %s0 = inlined_call_operand.vmem [shape: f32[8,64], index: 0, kind: input, shape index: {}]
  %s1 = inlined_call_operand.vmem [shape: f32[8,64], index: 1, kind: input, shape index: {}]
  %s2 = inlined_call_operand.vmem [shape: f32[64,192], index: 2, kind: input, shape index: {}]
  %s3 = inlined_call_operand.vmem [shape: f32[128,192], index: 3, kind: input, shape index: {}]
  %s4 = inlined_call_operand.vmem [shape: f32[1,192], index: 4, kind: input, shape index: {}]
  %s5 = inlined_call_operand.vmem [shape: f32[128,128], index: 5, kind: input, shape index: {}]
  %s6 = inlined_call_operand.vmem [shape: f32[1,128], index: 6, kind: input, shape index: {}]
  %s7 = inlined_call_operand.vmem [shape: f32[64,128], index: 7, kind: input, shape index: {}]
  %s8 = inlined_call_operand.vmem [shape: f32[1,128], index: 8, kind: input, shape index: {}]
  %s9 = inlined_call_operand.vmem [shape: f32[32,128], index: 9, kind: output, shape index: {}]
  %s10 = sld [smem:[#allocation0]]
  $region46: #{tree_lstm_forward.1} parent=0
    _
  %s12 = ssub.s32 1, %s10
  %s13 = scalar_select 0, %s12, %s10
  // Predicated region
  $region2: #{tree_lstm_forward.1} parent=0 // pred_check
    _
  $region3: #{tree_lstm_forward.1} parent=0 // pred_check_branch
    %15 = sbr.rel (0) target = $region5
  $region4: #{tree_lstm_forward.1} parent=0 // pred_region
    _
  $region5: #{tree_lstm_forward.1} parent=0 // pred_fallthru
    _
  // Predicated region
  $region6: #{tree_lstm_forward.1} parent=0 // pred_check
    _
  $region7: #{tree_lstm_forward.1} parent=0 // pred_check_branch
    %17 = sbr.rel (0) target = $region9
  $region8: #{tree_lstm_forward.1} parent=0 // pred_region
    _
  $region9: #{tree_lstm_forward.1} parent=0 // pred_fallthru
    _
  // Predicated region
  $region10: #{tree_lstm_forward.1} parent=0 // pred_check
    _
  $region11: #{tree_lstm_forward.1} parent=0 // pred_check_branch
    %19 = sbr.rel (0) target = $region13
  $region12: #{tree_lstm_forward.1} parent=0 // pred_region
    _
  $region13: #{tree_lstm_forward.1} parent=0 // pred_fallthru
    _
  // Predicated region
  $region14: #{tree_lstm_forward.1} parent=0 // pred_check
    _
  $region15: #{tree_lstm_forward.1} parent=0 // pred_check_branch
    %21 = sbr.rel (0) target = $region17
  $region16: #{tree_lstm_forward.1} parent=0 // pred_region
    _
  $region17: #{tree_lstm_forward.1} parent=0 // pred_fallthru
    _
  // Predicated region
  $region18: #{tree_lstm_forward.1} parent=0 // pred_check
    _
  $region19: #{tree_lstm_forward.1} parent=0 // pred_check_branch
    %23 = sbr.rel (0) target = $region21
  $region20: #{tree_lstm_forward.1} parent=0 // pred_region
    _
  $region21: #{tree_lstm_forward.1} parent=0 // pred_fallthru
    _
  // Predicated region
  $region22: #{tree_lstm_forward.1} parent=0 // pred_check
    _
  $region23: #{tree_lstm_forward.1} parent=0 // pred_check_branch
    %25 = sbr.rel (0) target = $region25
  $region24: #{tree_lstm_forward.1} parent=0 // pred_region
    _
  $region25: #{tree_lstm_forward.1} parent=0 // pred_fallthru
    _
  // Predicated region
  $region26: #{tree_lstm_forward.1} parent=0 // pred_check
    _
  $region27: #{tree_lstm_forward.1} parent=0 // pred_check_branch
    %27 = sbr.rel (0) target = $region29
  $region28: #{tree_lstm_forward.1} parent=0 // pred_region
    _
  $region29: #{tree_lstm_forward.1} parent=0 // pred_fallthru
    _
  // Predicated region
  $region30: #{tree_lstm_forward.1} parent=0 // pred_check
    _
  $region31: #{tree_lstm_forward.1} parent=0 // pred_check_branch
    %29 = sbr.rel (0) target = $region33
  $region32: #{tree_lstm_forward.1} parent=0 // pred_region
    _
  $region33: #{tree_lstm_forward.1} parent=0 // pred_fallthru
    _
  // Predicated region
  $region34: #{tree_lstm_forward.1} parent=0 // pred_check
    _
  $region35: #{tree_lstm_forward.1} parent=0 // pred_check_branch
    %31 = sbr.rel (0) target = $region37
  $region36: #{tree_lstm_forward.1} parent=0 // pred_region
    _
  $region37: #{tree_lstm_forward.1} parent=0 // pred_fallthru
    _
  %vm32 = vcmask 523264
  %33 = vst.msk [vmem:[#allocation2] sm:$0xff] %vm32, 0.0
  %34 = vst.msk [vmem:[#allocation2 + $0x8] sm:$0xff] %vm32, 0.0
  %35 = vst.msk [vmem:[#allocation2 + $0x10] sm:$0xff] %vm32, 0.0
  %36 = vst.msk [vmem:[#allocation2 + $0x18] sm:$0xff] %vm32, 0.0
  %37 = vst.msk [vmem:[#allocation3] sm:$0xff] %vm32, 0.0
  %38 = vst.msk [vmem:[#allocation3 + $0x8] sm:$0xff] %vm32, 0.0
  %39 = vst.msk [vmem:[#allocation3 + $0x10] sm:$0xff] %vm32, 0.0
  %40 = vst.msk [vmem:[#allocation3 + $0x18] sm:$0xff] %vm32, 0.0
  %v41 = vld [vmem:[%s4] sm:$0x3]
  %v42 = vld [vmem:[%s6] sm:$0x1]
  %v43 = vld [vmem:[%s0] sm:$0xff]
  %v44 = vld [vmem:[%s2] sm:$0xff]
  %v45 = vld [vmem:[%s2 + $0x8] sm:$0xff]
  %v46 = vld [vmem:[%s2 + $0x10] sm:$0xff]
  %v47 = vld [vmem:[%s2 + $0x18] sm:$0xff]
  %v48 = vld [vmem:[%s2 + $0x20] sm:$0xff]
  %v49 = vld [vmem:[%s2 + $0x28] sm:$0xff]
  %v50 = vld [vmem:[%s2 + $0x30] sm:$0xff]
  %v51 = vld [vmem:[%s2 + $0x38] sm:$0xff]
  %v52 = vld [vmem:[%s2 + $0x40] sm:$0xff]
  %v53 = vld [vmem:[%s2 + $0x48] sm:$0xff]
  %v54 = vld [vmem:[%s2 + $0x50] sm:$0xff]
  %v55 = vld [vmem:[%s2 + $0x58] sm:$0xff]
  %v56 = vld [vmem:[%s2 + $0x60] sm:$0xff]
  %v57 = vld [vmem:[%s2 + $0x68] sm:$0xff]
  %v58 = vld [vmem:[%s2 + $0x70] sm:$0xff]
  %v59 = vld [vmem:[%s2 + $0x78] sm:$0xff]
  %v61 = vlaneseq
  %v62 = vshrl.u32 %v61, 7
  %v63 = vsub.s32 0, %v62
  %v64 = vrot.slane %v41, %v63
  %v65 = vlaneseq
  %v66 = vshrl.u32 %v65, 7
  %v67 = vsub.s32 1, %v66
  %v68 = vrot.slane %v41, %v67
  %v72 = vsel %vm32, %v43, 0
  %74 = vmatprep.subr.mxu0 %v45
  %75 = vmatpush1.msra.mxu0 %v44
  %76 = vmatprep.subr.mxu0 %v47
  %77 = vmatpush1.msra.mxu0 %v46
  %78 = vmatprep.subr.mxu0 %v49
  %79 = vmatpush1.msra.mxu0 %v48
  %80 = vmatprep.subr.mxu0 %v51
  %81 = vmatpush1.msra.mxu0 %v50
  %82 = vmatprep.subr.mxu0 %v53
  %83 = vmatpush1.msra.mxu0 %v52
  %84 = vmatprep.subr.mxu0 %v55
  %85 = vmatpush1.msra.mxu0 %v54
  %86 = vmatprep.subr.mxu0 %v57
  %87 = vmatpush1.msra.mxu0 %v56
  %88 = vmatprep.subr.mxu0 %v59
  %89 = vmatpush1.msra.mxu0 %v58
  %90 = vmatprep.subr.mxu0 0.0
  %91 = vmatpush1.msra.mxu0 0.0
  %92 = vmatprep.subr.mxu0 0.0
  %93 = vmatpush1.msra.mxu0 0.0
  %94 = vmatprep.subr.mxu0 0.0
  %95 = vmatpush1.msra.mxu0 0.0
  %96 = vmatprep.subr.mxu0 0.0
  %97 = vmatpush1.msra.mxu0 0.0
  %98 = vmatprep.subr.mxu0 0.0
  %99 = vmatpush1.msra.mxu0 0.0
  %100 = vmatprep.subr.mxu0 0.0
  %101 = vmatpush1.msra.mxu0 0.0
  %102 = vmatprep.subr.mxu0 0.0
  %103 = vmatpush1.msra.mxu0 0.0
  %104 = vmatprep.subr.mxu0 0.0
  %105 = vmatpush1.msra.mxu0 0.0
  %106 = vmatprep.subr.mxu0 0.0
  %107 = vmatpush1.msra.mxu0 0.0
  %108 = vmatprep.subr.mxu0 0.0
  %109 = vmatpush1.msra.mxu0 0.0
  %110 = vmatprep.subr.mxu0 0.0
  %111 = vmatpush1.msra.mxu0 0.0
  %112 = vmatprep.subr.mxu0 0.0
  %113 = vmatpush1.msra.mxu0 0.0
  %114 = vmatprep.subr.mxu0 0.0
  %115 = vmatpush1.msra.mxu0 0.0
  %116 = vmatprep.subr.mxu0 0.0
  %117 = vmatpush1.msra.mxu0 0.0
  %118 = vmatprep.subr.mxu0 0.0
  %119 = vmatpush1.msra.mxu0 0.0
  %120 = vmatprep.subr.mxu0 0.0
  %121 = vmatpush1.msra.mxu0 0.0
  %122 = vmatprep.subr.mxu0 0.0
  %123 = vmatpush1.msra.mxu0 0.0
  %124 = vmatprep.subr.mxu0 0.0
  %125 = vmatpush1.msra.mxu0 0.0
  %126 = vmatprep.subr.mxu0 0.0
  %127 = vmatpush1.msra.mxu0 0.0
  %128 = vmatprep.subr.mxu0 0.0
  %129 = vmatpush1.msra.mxu0 0.0
  %130 = vmatprep.subr.mxu0 0.0
  %131 = vmatpush1.msra.mxu0 0.0
  %132 = vmatprep.subr.mxu0 0.0
  %133 = vmatpush1.msra.mxu0 0.0
  %134 = vmatprep.subr.mxu0 0.0
  %135 = vmatpush1.msra.mxu0 0.0
  %136 = vmatprep.subr.mxu0 0.0
  %137 = vmatpush1.msra.mxu0 0.0
  %138 = vmatprep.mubr.f32.mxu0 0.0
  %139 = vmatmul.mubr.f32.gmra.mrb[0].mxu0 %v72
  %v140 = vpop.f32.mrb[0].mxu0
  %v141 = vadd.f32 %v64, %v140
  %v142 = vpop.f32.mrb[0].mxu0
  %v143 = vadd.f32 %v68, %v142
  %144 = vdwg.mxu0
  %v145 = vld [vmem:[%s1] sm:$0xff]
  %v146 = vxor.u32 %v141, 2147483648
  %v147 = vmul.f32 %v146, 1.442695
  %v148 = vpow.pop %v147
  %v149 = vadd.f32 %v148, 1.0
  %v150 = vrcp.pop %v149
  %v151 = vmul.f32 1.0, %v150
  %v152 = vtanh.pop %v143
  %v153 = vmul.f32 %v151, %v152
  %v154 = vadd.f32 %v153, %v145
  %v155 = vtanh.pop %v154
  %157 = vrot.lane.b32.xlu0 %v155, 64
  %v158 = vpop.permute.xlu0 %157
  %v160 = vmul.f32 %v151, %v158
  %162 = vrot.lane.b32.xlu0 %v160, 64
  %v163 = vpop.permute.xlu0 %162
  %165 = vst.msk [vmem:[#allocation2] sm:$0xff] %vm32, %v163
  %166 = vst.msk [vmem:[#allocation3] sm:$0xff] %vm32, %v154
  %v167 = vld [vmem:[#allocation2] ss:$2 sm:$0xf]
  %s168 = scalar_lea.vmem [#allocation2], 1
  %v169 = vld [vmem:[%s168] ss:$2 sm:$0xf]
  %v170 = vld [vmem:[#allocation3] ss:$2 sm:$0xf]
  %s171 = scalar_lea.vmem [#allocation3], 1
  %v172 = vld [vmem:[%s171] ss:$2 sm:$0xf]
  %174 = vrot.lane.b32.xlu0 %v169, 64
  %v175 = vpop.permute.xlu0 %174
  %v177 = vsel %vm32, %v167, %v175
  %179 = vrot.lane.b32.xlu0 %v172, 64
  %v180 = vpop.permute.xlu0 %179
  %v182 = vsel %vm32, %v170, %v180
  %v183 = vld [vmem:[%s5] sm:$0xff]
  %v184 = vld [vmem:[%s5 + $0x8] sm:$0xff]
  %v185 = vld [vmem:[%s5 + $0x10] sm:$0xff]
  %v186 = vld [vmem:[%s5 + $0x18] sm:$0xff]
  %v187 = vld [vmem:[%s5 + $0x20] sm:$0xff]
  %v188 = vld [vmem:[%s5 + $0x28] sm:$0xff]
  %v189 = vld [vmem:[%s5 + $0x30] sm:$0xff]
  %v190 = vld [vmem:[%s5 + $0x38] sm:$0xff]
  %v191 = vld [vmem:[%s5 + $0x40] sm:$0xff]
  %v192 = vld [vmem:[%s5 + $0x48] sm:$0xff]
  %v193 = vld [vmem:[%s5 + $0x50] sm:$0xff]
  %v194 = vld [vmem:[%s5 + $0x58] sm:$0xff]
  %v195 = vld [vmem:[%s5 + $0x60] sm:$0xff]
  %v196 = vld [vmem:[%s5 + $0x68] sm:$0xff]
  %v197 = vld [vmem:[%s5 + $0x70] sm:$0xff]
  %v198 = vld [vmem:[%s5 + $0x78] sm:$0xff]
  %v200 = vlaneseq
  %v201 = vshrl.u32 %v200, 7
  %v202 = vsub.s32 0, %v201
  %v203 = vrot.slane %v42, %v202
  %205 = vmatprep.subr.mxu0 0.0
  %206 = vmatpush1.msra.mxu0 %v183
  %207 = vmatprep.subr.mxu0 0.0
  %208 = vmatpush1.msra.mxu0 %v184
  %209 = vmatprep.subr.mxu0 0.0
  %210 = vmatpush1.msra.mxu0 %v185
  %211 = vmatprep.subr.mxu0 0.0
  %212 = vmatpush1.msra.mxu0 %v186
  %213 = vmatprep.subr.mxu0 0.0
  %214 = vmatpush1.msra.mxu0 %v187
  %215 = vmatprep.subr.mxu0 0.0
  %216 = vmatpush1.msra.mxu0 %v188
  %217 = vmatprep.subr.mxu0 0.0
  %218 = vmatpush1.msra.mxu0 %v189
  %219 = vmatprep.subr.mxu0 0.0
  %220 = vmatpush1.msra.mxu0 %v190
  %221 = vmatprep.subr.mxu0 0.0
  %222 = vmatpush1.msra.mxu0 %v191
  %223 = vmatprep.subr.mxu0 0.0
  %224 = vmatpush1.msra.mxu0 %v192
  %225 = vmatprep.subr.mxu0 0.0
  %226 = vmatpush1.msra.mxu0 %v193
  %227 = vmatprep.subr.mxu0 0.0
  %228 = vmatpush1.msra.mxu0 %v194
  %229 = vmatprep.subr.mxu0 0.0
  %230 = vmatpush1.msra.mxu0 %v195
  %231 = vmatprep.subr.mxu0 0.0
  %232 = vmatpush1.msra.mxu0 %v196
  %233 = vmatprep.subr.mxu0 0.0
  %234 = vmatpush1.msra.mxu0 %v197
  %235 = vmatprep.subr.mxu0 0.0
  %236 = vmatpush1.msra.mxu0 %v198
  %237 = vmatprep.subr.mxu0 0.0
  %238 = vmatpush1.msra.mxu0 0.0
  %239 = vmatprep.subr.mxu0 0.0
  %240 = vmatpush1.msra.mxu0 0.0
  %241 = vmatprep.subr.mxu0 0.0
  %242 = vmatpush1.msra.mxu0 0.0
  %243 = vmatprep.subr.mxu0 0.0
  %244 = vmatpush1.msra.mxu0 0.0
  %245 = vmatprep.subr.mxu0 0.0
  %246 = vmatpush1.msra.mxu0 0.0
  %247 = vmatprep.subr.mxu0 0.0
  %248 = vmatpush1.msra.mxu0 0.0
  %249 = vmatprep.subr.mxu0 0.0
  %250 = vmatpush1.msra.mxu0 0.0
  %251 = vmatprep.subr.mxu0 0.0
  %252 = vmatpush1.msra.mxu0 0.0
  %253 = vmatprep.subr.mxu0 0.0
  %254 = vmatpush1.msra.mxu0 0.0
  %255 = vmatprep.subr.mxu0 0.0
  %256 = vmatpush1.msra.mxu0 0.0
  %257 = vmatprep.subr.mxu0 0.0
  %258 = vmatpush1.msra.mxu0 0.0
  %259 = vmatprep.subr.mxu0 0.0
  %260 = vmatpush1.msra.mxu0 0.0
  %261 = vmatprep.subr.mxu0 0.0
  %262 = vmatpush1.msra.mxu0 0.0
  %263 = vmatprep.subr.mxu0 0.0
  %264 = vmatpush1.msra.mxu0 0.0
  %265 = vmatprep.subr.mxu0 0.0
  %266 = vmatpush1.msra.mxu0 0.0
  %267 = vmatprep.subr.mxu0 0.0
  %268 = vmatpush1.msra.mxu0 0.0
  %269 = vmatprep.mubr.f32.mxu0 0.0
  %270 = vmatmul.mubr.f32.gmra.mrb[0].mxu0 %v177
  %v271 = vpop.f32.mrb[0].mxu0
  %v272 = vadd.f32 %v203, %v271
  %v273 = vpop.f32.mrb[0].mxu0
  %274 = vdwg.mxu0
  %v275 = vxor.u32 %v272, 2147483648
  %v276 = vmul.f32 %v275, 1.442695
  %v277 = vpow.pop %v276
  %v278 = vadd.f32 %v277, 1.0
  %v279 = vrcp.pop %v278
  %v280 = vmul.f32 1.0, %v279
  %v281 = vmul.f32 %v280, %v182
  %283 = vrot.lane.b32.xlu0 %v281, 64
  %v284 = vpop.permute.xlu0 %283
  %v286 = vadd.f32 %v281, %v284
  %v287 = vld [vmem:[%s3] sm:$0xff]
  %v288 = vld [vmem:[%s3 + $0x8] sm:$0xff]
  %v289 = vld [vmem:[%s3 + $0x10] sm:$0xff]
  %v290 = vld [vmem:[%s3 + $0x18] sm:$0xff]
  %v291 = vld [vmem:[%s3 + $0x20] sm:$0xff]
  %v292 = vld [vmem:[%s3 + $0x28] sm:$0xff]
  %v293 = vld [vmem:[%s3 + $0x30] sm:$0xff]
  %v294 = vld [vmem:[%s3 + $0x38] sm:$0xff]
  %v295 = vld [vmem:[%s3 + $0x40] sm:$0xff]
  %v296 = vld [vmem:[%s3 + $0x48] sm:$0xff]
  %v297 = vld [vmem:[%s3 + $0x50] sm:$0xff]
  %v298 = vld [vmem:[%s3 + $0x58] sm:$0xff]
  %v299 = vld [vmem:[%s3 + $0x60] sm:$0xff]
  %v300 = vld [vmem:[%s3 + $0x68] sm:$0xff]
  %v301 = vld [vmem:[%s3 + $0x70] sm:$0xff]
  %v302 = vld [vmem:[%s3 + $0x78] sm:$0xff]
  %v303 = vld [vmem:[%s3 + $0x80] sm:$0xff]
  %v304 = vld [vmem:[%s3 + $0x88] sm:$0xff]
  %v305 = vld [vmem:[%s3 + $0x90] sm:$0xff]
  %v306 = vld [vmem:[%s3 + $0x98] sm:$0xff]
  %v307 = vld [vmem:[%s3 + $0xa0] sm:$0xff]
  %v308 = vld [vmem:[%s3 + $0xa8] sm:$0xff]
  %v309 = vld [vmem:[%s3 + $0xb0] sm:$0xff]
  %v310 = vld [vmem:[%s3 + $0xb8] sm:$0xff]
  %v311 = vld [vmem:[%s3 + $0xc0] sm:$0xff]
  %v312 = vld [vmem:[%s3 + $0xc8] sm:$0xff]
  %v313 = vld [vmem:[%s3 + $0xd0] sm:$0xff]
  %v314 = vld [vmem:[%s3 + $0xd8] sm:$0xff]
  %v315 = vld [vmem:[%s3 + $0xe0] sm:$0xff]
  %v316 = vld [vmem:[%s3 + $0xe8] sm:$0xff]
  %v317 = vld [vmem:[%s3 + $0xf0] sm:$0xff]
  %v318 = vld [vmem:[%s3 + $0xf8] sm:$0xff]
  %319 = vmatprep.subr.mxu0 %v288
  %320 = vmatpush1.msra.mxu0 %v287
  %321 = vmatprep.subr.mxu0 %v290
  %322 = vmatpush1.msra.mxu0 %v289
  %323 = vmatprep.subr.mxu0 %v292
  %324 = vmatpush1.msra.mxu0 %v291
  %325 = vmatprep.subr.mxu0 %v294
  %326 = vmatpush1.msra.mxu0 %v293
  %327 = vmatprep.subr.mxu0 %v296
  %328 = vmatpush1.msra.mxu0 %v295
  %329 = vmatprep.subr.mxu0 %v298
  %330 = vmatpush1.msra.mxu0 %v297
  %331 = vmatprep.subr.mxu0 %v300
  %332 = vmatpush1.msra.mxu0 %v299
  %333 = vmatprep.subr.mxu0 %v302
  %334 = vmatpush1.msra.mxu0 %v301
  %335 = vmatprep.subr.mxu0 %v304
  %336 = vmatpush1.msra.mxu0 %v303
  %337 = vmatprep.subr.mxu0 %v306
  %338 = vmatpush1.msra.mxu0 %v305
  %339 = vmatprep.subr.mxu0 %v308
  %340 = vmatpush1.msra.mxu0 %v307
  %341 = vmatprep.subr.mxu0 %v310
  %342 = vmatpush1.msra.mxu0 %v309
  %343 = vmatprep.subr.mxu0 %v312
  %344 = vmatpush1.msra.mxu0 %v311
  %345 = vmatprep.subr.mxu0 %v314
  %346 = vmatpush1.msra.mxu0 %v313
  %347 = vmatprep.subr.mxu0 %v316
  %348 = vmatpush1.msra.mxu0 %v315
  %349 = vmatprep.subr.mxu0 %v318
  %350 = vmatpush1.msra.mxu0 %v317
  %351 = vmatprep.subr.mxu0 0.0
  %352 = vmatpush1.msra.mxu0 0.0
  %353 = vmatprep.subr.mxu0 0.0
  %354 = vmatpush1.msra.mxu0 0.0
  %355 = vmatprep.subr.mxu0 0.0
  %356 = vmatpush1.msra.mxu0 0.0
  %357 = vmatprep.subr.mxu0 0.0
  %358 = vmatpush1.msra.mxu0 0.0
  %359 = vmatprep.subr.mxu0 0.0
  %360 = vmatpush1.msra.mxu0 0.0
  %361 = vmatprep.subr.mxu0 0.0
  %362 = vmatpush1.msra.mxu0 0.0
  %363 = vmatprep.subr.mxu0 0.0
  %364 = vmatpush1.msra.mxu0 0.0
  %365 = vmatprep.subr.mxu0 0.0
  %366 = vmatpush1.msra.mxu0 0.0
  %367 = vmatprep.subr.mxu0 0.0
  %368 = vmatpush1.msra.mxu0 0.0
  %369 = vmatprep.subr.mxu0 0.0
  %370 = vmatpush1.msra.mxu0 0.0
  %371 = vmatprep.subr.mxu0 0.0
  %372 = vmatpush1.msra.mxu0 0.0
  %373 = vmatprep.subr.mxu0 0.0
  %374 = vmatpush1.msra.mxu0 0.0
  %375 = vmatprep.subr.mxu0 0.0
  %376 = vmatpush1.msra.mxu0 0.0
  %377 = vmatprep.subr.mxu0 0.0
  %378 = vmatpush1.msra.mxu0 0.0
  %379 = vmatprep.subr.mxu0 0.0
  %380 = vmatpush1.msra.mxu0 0.0
  %381 = vmatprep.subr.mxu0 0.0
  %382 = vmatpush1.msra.mxu0 0.0
  %383 = vmatprep.mubr.f32.mxu0 0.0
  %384 = vmatmul.mubr.f32.gmra.mrb[0].mxu0 %v177
  %v385 = vpop.f32.mrb[0].mxu0
  %v386 = vadd.f32 %v64, %v385
  %v387 = vpop.f32.mrb[0].mxu0
  %v388 = vadd.f32 %v68, %v387
  %389 = vdwg.mxu0
  %v390 = vxor.u32 %v386, 2147483648
  %v391 = vmul.f32 %v390, 1.442695
  %v392 = vpow.pop %v391
  %v393 = vadd.f32 %v392, 1.0
  %v394 = vrcp.pop %v393
  %v395 = vmul.f32 1.0, %v394
  %v396 = vtanh.pop %v388
  %v397 = vmul.f32 %v395, %v396
  %v398 = vadd.f32 %v397, %v286
  %v399 = vtanh.pop %v398
  %401 = vrot.lane.b32.xlu0 %v399, 64
  %v402 = vpop.permute.xlu0 %401
  %v404 = vmul.f32 %v395, %v402
  %406 = vrot.lane.b32.xlu0 %v404, 64
  %v407 = vpop.permute.xlu0 %406
  %vm409 = vcmask 519168
  %410 = vst.msk [vmem:[#allocation2 + $0x8] sm:$0xf] %vm409, %v407
  %411 = vst.msk [vmem:[#allocation3 + $0x8] sm:$0xf] %vm409, %v398
  %s412 = scalar_lea.vmem [#allocation2], 8
  %v413 = vld [vmem:[%s412] ss:$2 sm:$0x3]
  %s414 = scalar_lea.vmem [#allocation2], 9
  %v415 = vld [vmem:[%s414] ss:$2 sm:$0x3]
  %s416 = scalar_lea.vmem [#allocation3], 8
  %v417 = vld [vmem:[%s416] ss:$2 sm:$0x3]
  %s418 = scalar_lea.vmem [#allocation3], 9
  %v419 = vld [vmem:[%s418] ss:$2 sm:$0x3]
  %421 = vrot.lane.b32.xlu0 %v415, 64
  %v422 = vpop.permute.xlu0 %421
  %v424 = vsel %vm32, %v413, %v422
  %426 = vrot.lane.b32.xlu0 %v419, 64
  %v427 = vpop.permute.xlu0 %426
  %v429 = vsel %vm32, %v417, %v427
  %v430 = vld [vmem:[%s5] sm:$0xff]
  %v431 = vld [vmem:[%s5 + $0x8] sm:$0xff]
  %v432 = vld [vmem:[%s5 + $0x10] sm:$0xff]
  %v433 = vld [vmem:[%s5 + $0x18] sm:$0xff]
  %v434 = vld [vmem:[%s5 + $0x20] sm:$0xff]
  %v435 = vld [vmem:[%s5 + $0x28] sm:$0xff]
  %v436 = vld [vmem:[%s5 + $0x30] sm:$0xff]
  %v437 = vld [vmem:[%s5 + $0x38] sm:$0xff]
  %v438 = vld [vmem:[%s5 + $0x40] sm:$0xff]
  %v439 = vld [vmem:[%s5 + $0x48] sm:$0xff]
  %v440 = vld [vmem:[%s5 + $0x50] sm:$0xff]
  %v441 = vld [vmem:[%s5 + $0x58] sm:$0xff]
  %v442 = vld [vmem:[%s5 + $0x60] sm:$0xff]
  %v443 = vld [vmem:[%s5 + $0x68] sm:$0xff]
  %v444 = vld [vmem:[%s5 + $0x70] sm:$0xff]
  %v445 = vld [vmem:[%s5 + $0x78] sm:$0xff]
  %446 = vmatprep.subr.mxu0 0.0
  %447 = vmatpush1.msra.mxu0 %v430
  %448 = vmatprep.subr.mxu0 0.0
  %449 = vmatpush1.msra.mxu0 %v431
  %450 = vmatprep.subr.mxu0 0.0
  %451 = vmatpush1.msra.mxu0 %v432
  %452 = vmatprep.subr.mxu0 0.0
  %453 = vmatpush1.msra.mxu0 %v433
  %454 = vmatprep.subr.mxu0 0.0
  %455 = vmatpush1.msra.mxu0 %v434
  %456 = vmatprep.subr.mxu0 0.0
  %457 = vmatpush1.msra.mxu0 %v435
  %458 = vmatprep.subr.mxu0 0.0
  %459 = vmatpush1.msra.mxu0 %v436
  %460 = vmatprep.subr.mxu0 0.0
  %461 = vmatpush1.msra.mxu0 %v437
  %462 = vmatprep.subr.mxu0 0.0
  %463 = vmatpush1.msra.mxu0 %v438
  %464 = vmatprep.subr.mxu0 0.0
  %465 = vmatpush1.msra.mxu0 %v439
  %466 = vmatprep.subr.mxu0 0.0
  %467 = vmatpush1.msra.mxu0 %v440
  %468 = vmatprep.subr.mxu0 0.0
  %469 = vmatpush1.msra.mxu0 %v441
  %470 = vmatprep.subr.mxu0 0.0
  %471 = vmatpush1.msra.mxu0 %v442
  %472 = vmatprep.subr.mxu0 0.0
  %473 = vmatpush1.msra.mxu0 %v443
  %474 = vmatprep.subr.mxu0 0.0
  %475 = vmatpush1.msra.mxu0 %v444
  %476 = vmatprep.subr.mxu0 0.0
  %477 = vmatpush1.msra.mxu0 %v445
  %478 = vmatprep.subr.mxu0 0.0
  %479 = vmatpush1.msra.mxu0 0.0
  %480 = vmatprep.subr.mxu0 0.0
  %481 = vmatpush1.msra.mxu0 0.0
  %482 = vmatprep.subr.mxu0 0.0
  %483 = vmatpush1.msra.mxu0 0.0
  %484 = vmatprep.subr.mxu0 0.0
  %485 = vmatpush1.msra.mxu0 0.0
  %486 = vmatprep.subr.mxu0 0.0
  %487 = vmatpush1.msra.mxu0 0.0
  %488 = vmatprep.subr.mxu0 0.0
  %489 = vmatpush1.msra.mxu0 0.0
  %490 = vmatprep.subr.mxu0 0.0
  %491 = vmatpush1.msra.mxu0 0.0
  %492 = vmatprep.subr.mxu0 0.0
  %493 = vmatpush1.msra.mxu0 0.0
  %494 = vmatprep.subr.mxu0 0.0
  %495 = vmatpush1.msra.mxu0 0.0
  %496 = vmatprep.subr.mxu0 0.0
  %497 = vmatpush1.msra.mxu0 0.0
  %498 = vmatprep.subr.mxu0 0.0
  %499 = vmatpush1.msra.mxu0 0.0
  %500 = vmatprep.subr.mxu0 0.0
  %501 = vmatpush1.msra.mxu0 0.0
  %502 = vmatprep.subr.mxu0 0.0
  %503 = vmatpush1.msra.mxu0 0.0
  %504 = vmatprep.subr.mxu0 0.0
  %505 = vmatpush1.msra.mxu0 0.0
  %506 = vmatprep.subr.mxu0 0.0
  %507 = vmatpush1.msra.mxu0 0.0
  %508 = vmatprep.subr.mxu0 0.0
  %509 = vmatpush1.msra.mxu0 0.0
  %510 = vmatprep.mubr.f32.mxu0 0.0
  %511 = vmatmul.mubr.f32.gmra.mrb[0].mxu0 %v424
  %v512 = vpop.f32.mrb[0].mxu0
  %v513 = vadd.f32 %v203, %v512
  %v514 = vpop.f32.mrb[0].mxu0
  %515 = vdwg.mxu0
  %v516 = vxor.u32 %v513, 2147483648
  %v517 = vmul.f32 %v516, 1.442695
  %v518 = vpow.pop %v517
  %v519 = vadd.f32 %v518, 1.0
  %v520 = vrcp.pop %v519
  %v521 = vmul.f32 1.0, %v520
  %v522 = vmul.f32 %v521, %v429
  %524 = vrot.lane.b32.xlu0 %v522, 64
  %v525 = vpop.permute.xlu0 %524
  %v527 = vadd.f32 %v522, %v525
  %v528 = vld [vmem:[%s3] sm:$0xff]
  %v529 = vld [vmem:[%s3 + $0x8] sm:$0xff]
  %v530 = vld [vmem:[%s3 + $0x10] sm:$0xff]
  %v531 = vld [vmem:[%s3 + $0x18] sm:$0xff]
  %v532 = vld [vmem:[%s3 + $0x20] sm:$0xff]
  %v533 = vld [vmem:[%s3 + $0x28] sm:$0xff]
  %v534 = vld [vmem:[%s3 + $0x30] sm:$0xff]
  %v535 = vld [vmem:[%s3 + $0x38] sm:$0xff]
  %v536 = vld [vmem:[%s3 + $0x40] sm:$0xff]
  %v537 = vld [vmem:[%s3 + $0x48] sm:$0xff]
  %v538 = vld [vmem:[%s3 + $0x50] sm:$0xff]
  %v539 = vld [vmem:[%s3 + $0x58] sm:$0xff]
  %v540 = vld [vmem:[%s3 + $0x60] sm:$0xff]
  %v541 = vld [vmem:[%s3 + $0x68] sm:$0xff]
  %v542 = vld [vmem:[%s3 + $0x70] sm:$0xff]
  %v543 = vld [vmem:[%s3 + $0x78] sm:$0xff]
  %v544 = vld [vmem:[%s3 + $0x80] sm:$0xff]
  %v545 = vld [vmem:[%s3 + $0x88] sm:$0xff]
  %v546 = vld [vmem:[%s3 + $0x90] sm:$0xff]
  %v547 = vld [vmem:[%s3 + $0x98] sm:$0xff]
  %v548 = vld [vmem:[%s3 + $0xa0] sm:$0xff]
  %v549 = vld [vmem:[%s3 + $0xa8] sm:$0xff]
  %v550 = vld [vmem:[%s3 + $0xb0] sm:$0xff]
  %v551 = vld [vmem:[%s3 + $0xb8] sm:$0xff]
  %v552 = vld [vmem:[%s3 + $0xc0] sm:$0xff]
  %v553 = vld [vmem:[%s3 + $0xc8] sm:$0xff]
  %v554 = vld [vmem:[%s3 + $0xd0] sm:$0xff]
  %v555 = vld [vmem:[%s3 + $0xd8] sm:$0xff]
  %v556 = vld [vmem:[%s3 + $0xe0] sm:$0xff]
  %v557 = vld [vmem:[%s3 + $0xe8] sm:$0xff]
  %v558 = vld [vmem:[%s3 + $0xf0] sm:$0xff]
  %v559 = vld [vmem:[%s3 + $0xf8] sm:$0xff]
  %560 = vmatprep.subr.mxu0 %v529
  %561 = vmatpush1.msra.mxu0 %v528
  %562 = vmatprep.subr.mxu0 %v531
  %563 = vmatpush1.msra.mxu0 %v530
  %564 = vmatprep.subr.mxu0 %v533
  %565 = vmatpush1.msra.mxu0 %v532
  %566 = vmatprep.subr.mxu0 %v535
  %567 = vmatpush1.msra.mxu0 %v534
  %568 = vmatprep.subr.mxu0 %v537
  %569 = vmatpush1.msra.mxu0 %v536
  %570 = vmatprep.subr.mxu0 %v539
  %571 = vmatpush1.msra.mxu0 %v538
  %572 = vmatprep.subr.mxu0 %v541
  %573 = vmatpush1.msra.mxu0 %v540
  %574 = vmatprep.subr.mxu0 %v543
  %575 = vmatpush1.msra.mxu0 %v542
  %576 = vmatprep.subr.mxu0 %v545
  %577 = vmatpush1.msra.mxu0 %v544
  %578 = vmatprep.subr.mxu0 %v547
  %579 = vmatpush1.msra.mxu0 %v546
  %580 = vmatprep.subr.mxu0 %v549
  %581 = vmatpush1.msra.mxu0 %v548
  %582 = vmatprep.subr.mxu0 %v551
  %583 = vmatpush1.msra.mxu0 %v550
  %584 = vmatprep.subr.mxu0 %v553
  %585 = vmatpush1.msra.mxu0 %v552
  %586 = vmatprep.subr.mxu0 %v555
  %587 = vmatpush1.msra.mxu0 %v554
  %588 = vmatprep.subr.mxu0 %v557
  %589 = vmatpush1.msra.mxu0 %v556
  %590 = vmatprep.subr.mxu0 %v559
  %591 = vmatpush1.msra.mxu0 %v558
  %592 = vmatprep.subr.mxu0 0.0
  %593 = vmatpush1.msra.mxu0 0.0
  %594 = vmatprep.subr.mxu0 0.0
  %595 = vmatpush1.msra.mxu0 0.0
  %596 = vmatprep.subr.mxu0 0.0
  %597 = vmatpush1.msra.mxu0 0.0
  %598 = vmatprep.subr.mxu0 0.0
  %599 = vmatpush1.msra.mxu0 0.0
  %600 = vmatprep.subr.mxu0 0.0
  %601 = vmatpush1.msra.mxu0 0.0
  %602 = vmatprep.subr.mxu0 0.0
  %603 = vmatpush1.msra.mxu0 0.0
  %604 = vmatprep.subr.mxu0 0.0
  %605 = vmatpush1.msra.mxu0 0.0
  %606 = vmatprep.subr.mxu0 0.0
  %607 = vmatpush1.msra.mxu0 0.0
  %608 = vmatprep.subr.mxu0 0.0
  %609 = vmatpush1.msra.mxu0 0.0
  %610 = vmatprep.subr.mxu0 0.0
  %611 = vmatpush1.msra.mxu0 0.0
  %612 = vmatprep.subr.mxu0 0.0
  %613 = vmatpush1.msra.mxu0 0.0
  %614 = vmatprep.subr.mxu0 0.0
  %615 = vmatpush1.msra.mxu0 0.0
  %616 = vmatprep.subr.mxu0 0.0
  %617 = vmatpush1.msra.mxu0 0.0
  %618 = vmatprep.subr.mxu0 0.0
  %619 = vmatpush1.msra.mxu0 0.0
  %620 = vmatprep.subr.mxu0 0.0
  %621 = vmatpush1.msra.mxu0 0.0
  %622 = vmatprep.subr.mxu0 0.0
  %623 = vmatpush1.msra.mxu0 0.0
  %624 = vmatprep.mubr.f32.mxu0 0.0
  %625 = vmatmul.mubr.f32.gmra.mrb[0].mxu0 %v424
  %v626 = vpop.f32.mrb[0].mxu0
  %v627 = vadd.f32 %v64, %v626
  %v628 = vpop.f32.mrb[0].mxu0
  %v629 = vadd.f32 %v68, %v628
  %630 = vdwg.mxu0
  %v631 = vxor.u32 %v627, 2147483648
  %v632 = vmul.f32 %v631, 1.442695
  %v633 = vpow.pop %v632
  %v634 = vadd.f32 %v633, 1.0
  %v635 = vrcp.pop %v634
  %v636 = vmul.f32 1.0, %v635
  %v637 = vtanh.pop %v629
  %v638 = vmul.f32 %v636, %v637
  %v639 = vadd.f32 %v638, %v527
  %v640 = vtanh.pop %v639
  %642 = vrot.lane.b32.xlu0 %v640, 64
  %v643 = vpop.permute.xlu0 %642
  %v645 = vmul.f32 %v636, %v643
  %647 = vrot.lane.b32.xlu0 %v645, 64
  %v648 = vpop.permute.xlu0 %647
  %vm650 = vcmask 517120
  %651 = vst.msk [vmem:[#allocation2 + $0x10] sm:$0x3] %vm650, %v648
  %652 = vst.msk [vmem:[#allocation3 + $0x10] sm:$0x3] %vm650, %v639
  %s653 = scalar_lea.vmem [#allocation2], 16
  %v654 = vld [vmem:[%s653] ss:$2 sm:$0x1]
  %s655 = scalar_lea.vmem [#allocation2], 17
  %v656 = vld [vmem:[%s655] ss:$2 sm:$0x1]
  %s657 = scalar_lea.vmem [#allocation3], 16
  %v658 = vld [vmem:[%s657] ss:$2 sm:$0x1]
  %s659 = scalar_lea.vmem [#allocation3], 17
  %v660 = vld [vmem:[%s659] ss:$2 sm:$0x1]
  %662 = vrot.lane.b32.xlu0 %v656, 64
  %v663 = vpop.permute.xlu0 %662
  %v665 = vsel %vm32, %v654, %v663
  %667 = vrot.lane.b32.xlu0 %v660, 64
  %v668 = vpop.permute.xlu0 %667
  %v670 = vsel %vm32, %v658, %v668
  %v671 = vld [vmem:[%s5] sm:$0xff]
  %v672 = vld [vmem:[%s5 + $0x8] sm:$0xff]
  %v673 = vld [vmem:[%s5 + $0x10] sm:$0xff]
  %v674 = vld [vmem:[%s5 + $0x18] sm:$0xff]
  %v675 = vld [vmem:[%s5 + $0x20] sm:$0xff]
  %v676 = vld [vmem:[%s5 + $0x28] sm:$0xff]
  %v677 = vld [vmem:[%s5 + $0x30] sm:$0xff]
  %v678 = vld [vmem:[%s5 + $0x38] sm:$0xff]
  %v679 = vld [vmem:[%s5 + $0x40] sm:$0xff]
  %v680 = vld [vmem:[%s5 + $0x48] sm:$0xff]
  %v681 = vld [vmem:[%s5 + $0x50] sm:$0xff]
  %v682 = vld [vmem:[%s5 + $0x58] sm:$0xff]
  %v683 = vld [vmem:[%s5 + $0x60] sm:$0xff]
  %v684 = vld [vmem:[%s5 + $0x68] sm:$0xff]
  %v685 = vld [vmem:[%s5 + $0x70] sm:$0xff]
  %v686 = vld [vmem:[%s5 + $0x78] sm:$0xff]
  %687 = vmatprep.subr.mxu0 0.0
  %688 = vmatpush1.msra.mxu0 %v671
  %689 = vmatprep.subr.mxu0 0.0
  %690 = vmatpush1.msra.mxu0 %v672
  %691 = vmatprep.subr.mxu0 0.0
  %692 = vmatpush1.msra.mxu0 %v673
  %693 = vmatprep.subr.mxu0 0.0
  %694 = vmatpush1.msra.mxu0 %v674
  %695 = vmatprep.subr.mxu0 0.0
  %696 = vmatpush1.msra.mxu0 %v675
  %697 = vmatprep.subr.mxu0 0.0
  %698 = vmatpush1.msra.mxu0 %v676
  %699 = vmatprep.subr.mxu0 0.0
  %700 = vmatpush1.msra.mxu0 %v677
  %701 = vmatprep.subr.mxu0 0.0
  %702 = vmatpush1.msra.mxu0 %v678
  %703 = vmatprep.subr.mxu0 0.0
  %704 = vmatpush1.msra.mxu0 %v679
  %705 = vmatprep.subr.mxu0 0.0
  %706 = vmatpush1.msra.mxu0 %v680
  %707 = vmatprep.subr.mxu0 0.0
  %708 = vmatpush1.msra.mxu0 %v681
  %709 = vmatprep.subr.mxu0 0.0
  %710 = vmatpush1.msra.mxu0 %v682
  %711 = vmatprep.subr.mxu0 0.0
  %712 = vmatpush1.msra.mxu0 %v683
  %713 = vmatprep.subr.mxu0 0.0
  %714 = vmatpush1.msra.mxu0 %v684
  %715 = vmatprep.subr.mxu0 0.0
  %716 = vmatpush1.msra.mxu0 %v685
  %717 = vmatprep.subr.mxu0 0.0
  %718 = vmatpush1.msra.mxu0 %v686
  %719 = vmatprep.subr.mxu0 0.0
  %720 = vmatpush1.msra.mxu0 0.0
  %721 = vmatprep.subr.mxu0 0.0
  %722 = vmatpush1.msra.mxu0 0.0
  %723 = vmatprep.subr.mxu0 0.0
  %724 = vmatpush1.msra.mxu0 0.0
  %725 = vmatprep.subr.mxu0 0.0
  %726 = vmatpush1.msra.mxu0 0.0
  %727 = vmatprep.subr.mxu0 0.0
  %728 = vmatpush1.msra.mxu0 0.0
  %729 = vmatprep.subr.mxu0 0.0
  %730 = vmatpush1.msra.mxu0 0.0
  %731 = vmatprep.subr.mxu0 0.0
  %732 = vmatpush1.msra.mxu0 0.0
  %733 = vmatprep.subr.mxu0 0.0
  %734 = vmatpush1.msra.mxu0 0.0
  %735 = vmatprep.subr.mxu0 0.0
  %736 = vmatpush1.msra.mxu0 0.0
  %737 = vmatprep.subr.mxu0 0.0
  %738 = vmatpush1.msra.mxu0 0.0
  %739 = vmatprep.subr.mxu0 0.0
  %740 = vmatpush1.msra.mxu0 0.0
  %741 = vmatprep.subr.mxu0 0.0
  %742 = vmatpush1.msra.mxu0 0.0
  %743 = vmatprep.subr.mxu0 0.0
  %744 = vmatpush1.msra.mxu0 0.0
  %745 = vmatprep.subr.mxu0 0.0
  %746 = vmatpush1.msra.mxu0 0.0
  %747 = vmatprep.subr.mxu0 0.0
  %748 = vmatpush1.msra.mxu0 0.0
  %749 = vmatprep.subr.mxu0 0.0
  %750 = vmatpush1.msra.mxu0 0.0
  %751 = vmatprep.mubr.f32.mxu0 0.0
  %752 = vmatmul.mubr.f32.gmra.mrb[0].mxu0 %v665
  %v753 = vpop.f32.mrb[0].mxu0
  %v754 = vadd.f32 %v42, %v753
  %v755 = vpop.f32.mrb[0].mxu0
  %756 = vdwg.mxu0
  %v757 = vxor.u32 %v754, 2147483648
  %v758 = vmul.f32 %v757, 1.442695
  %v759 = vpow.pop %v758
  %v760 = vadd.f32 %v759, 1.0
  %v761 = vrcp.pop %v760
  %v762 = vmul.f32 1.0, %v761
  %v763 = vmul.f32 %v762, %v670
  %765 = vrot.lane.b32.xlu0 %v763, 64
  %v766 = vpop.permute.xlu0 %765
  %v768 = vadd.f32 %v763, %v766
  %v769 = vld [vmem:[%s3] sm:$0xff]
  %v770 = vld [vmem:[%s3 + $0x8] sm:$0xff]
  %v771 = vld [vmem:[%s3 + $0x10] sm:$0xff]
  %v772 = vld [vmem:[%s3 + $0x18] sm:$0xff]
  %v773 = vld [vmem:[%s3 + $0x20] sm:$0xff]
  %v774 = vld [vmem:[%s3 + $0x28] sm:$0xff]
  %v775 = vld [vmem:[%s3 + $0x30] sm:$0xff]
  %v776 = vld [vmem:[%s3 + $0x38] sm:$0xff]
  %v777 = vld [vmem:[%s3 + $0x40] sm:$0xff]
  %v778 = vld [vmem:[%s3 + $0x48] sm:$0xff]
  %v779 = vld [vmem:[%s3 + $0x50] sm:$0xff]
  %v780 = vld [vmem:[%s3 + $0x58] sm:$0xff]
  %v781 = vld [vmem:[%s3 + $0x60] sm:$0xff]
  %v782 = vld [vmem:[%s3 + $0x68] sm:$0xff]
  %v783 = vld [vmem:[%s3 + $0x70] sm:$0xff]
  %v784 = vld [vmem:[%s3 + $0x78] sm:$0xff]
  %v785 = vld [vmem:[%s3 + $0x80] sm:$0xff]
  %v786 = vld [vmem:[%s3 + $0x88] sm:$0xff]
  %v787 = vld [vmem:[%s3 + $0x90] sm:$0xff]
  %v788 = vld [vmem:[%s3 + $0x98] sm:$0xff]
  %v789 = vld [vmem:[%s3 + $0xa0] sm:$0xff]
  %v790 = vld [vmem:[%s3 + $0xa8] sm:$0xff]
  %v791 = vld [vmem:[%s3 + $0xb0] sm:$0xff]
  %v792 = vld [vmem:[%s3 + $0xb8] sm:$0xff]
  %v793 = vld [vmem:[%s3 + $0xc0] sm:$0xff]
  %v794 = vld [vmem:[%s3 + $0xc8] sm:$0xff]
  %v795 = vld [vmem:[%s3 + $0xd0] sm:$0xff]
  %v796 = vld [vmem:[%s3 + $0xd8] sm:$0xff]
  %v797 = vld [vmem:[%s3 + $0xe0] sm:$0xff]
  %v798 = vld [vmem:[%s3 + $0xe8] sm:$0xff]
  %v799 = vld [vmem:[%s3 + $0xf0] sm:$0xff]
  %v800 = vld [vmem:[%s3 + $0xf8] sm:$0xff]
  %801 = vmatprep.subr.mxu0 %v770
  %802 = vmatpush1.msra.mxu0 %v769
  %803 = vmatprep.subr.mxu0 %v772
  %804 = vmatpush1.msra.mxu0 %v771
  %805 = vmatprep.subr.mxu0 %v774
  %806 = vmatpush1.msra.mxu0 %v773
  %807 = vmatprep.subr.mxu0 %v776
  %808 = vmatpush1.msra.mxu0 %v775
  %809 = vmatprep.subr.mxu0 %v778
  %810 = vmatpush1.msra.mxu0 %v777
  %811 = vmatprep.subr.mxu0 %v780
  %812 = vmatpush1.msra.mxu0 %v779
  %813 = vmatprep.subr.mxu0 %v782
  %814 = vmatpush1.msra.mxu0 %v781
  %815 = vmatprep.subr.mxu0 %v784
  %816 = vmatpush1.msra.mxu0 %v783
  %817 = vmatprep.subr.mxu0 %v786
  %818 = vmatpush1.msra.mxu0 %v785
  %819 = vmatprep.subr.mxu0 %v788
  %820 = vmatpush1.msra.mxu0 %v787
  %821 = vmatprep.subr.mxu0 %v790
  %822 = vmatpush1.msra.mxu0 %v789
  %823 = vmatprep.subr.mxu0 %v792
  %824 = vmatpush1.msra.mxu0 %v791
  %825 = vmatprep.subr.mxu0 %v794
  %826 = vmatpush1.msra.mxu0 %v793
  %827 = vmatprep.subr.mxu0 %v796
  %828 = vmatpush1.msra.mxu0 %v795
  %829 = vmatprep.subr.mxu0 %v798
  %830 = vmatpush1.msra.mxu0 %v797
  %831 = vmatprep.subr.mxu0 %v800
  %832 = vmatpush1.msra.mxu0 %v799
  %833 = vmatprep.subr.mxu0 0.0
  %834 = vmatpush1.msra.mxu0 0.0
  %835 = vmatprep.subr.mxu0 0.0
  %836 = vmatpush1.msra.mxu0 0.0
  %837 = vmatprep.subr.mxu0 0.0
  %838 = vmatpush1.msra.mxu0 0.0
  %839 = vmatprep.subr.mxu0 0.0
  %840 = vmatpush1.msra.mxu0 0.0
  %841 = vmatprep.subr.mxu0 0.0
  %842 = vmatpush1.msra.mxu0 0.0
  %843 = vmatprep.subr.mxu0 0.0
  %844 = vmatpush1.msra.mxu0 0.0
  %845 = vmatprep.subr.mxu0 0.0
  %846 = vmatpush1.msra.mxu0 0.0
  %847 = vmatprep.subr.mxu0 0.0
  %848 = vmatpush1.msra.mxu0 0.0
  %849 = vmatprep.subr.mxu0 0.0
  %850 = vmatpush1.msra.mxu0 0.0
  %851 = vmatprep.subr.mxu0 0.0
  %852 = vmatpush1.msra.mxu0 0.0
  %853 = vmatprep.subr.mxu0 0.0
  %854 = vmatpush1.msra.mxu0 0.0
  %855 = vmatprep.subr.mxu0 0.0
  %856 = vmatpush1.msra.mxu0 0.0
  %857 = vmatprep.subr.mxu0 0.0
  %858 = vmatpush1.msra.mxu0 0.0
  %859 = vmatprep.subr.mxu0 0.0
  %860 = vmatpush1.msra.mxu0 0.0
  %861 = vmatprep.subr.mxu0 0.0
  %862 = vmatpush1.msra.mxu0 0.0
  %863 = vmatprep.subr.mxu0 0.0
  %864 = vmatpush1.msra.mxu0 0.0
  %865 = vmatprep.mubr.f32.mxu0 0.0
  %866 = vmatmul.mubr.f32.gmra.mrb[0].mxu0 %v665
  %v867 = vpop.f32.mrb[0].mxu0
  %v868 = vadd.f32 %v64, %v867
  %v869 = vpop.f32.mrb[0].mxu0
  %v870 = vadd.f32 %v68, %v869
  %871 = vdwg.mxu0
  %v872 = vxor.u32 %v868, 2147483648
  %v873 = vmul.f32 %v872, 1.442695
  %v874 = vpow.pop %v873
  %v875 = vadd.f32 %v874, 1.0
  %v876 = vrcp.pop %v875
  %v877 = vmul.f32 1.0, %v876
  %v878 = vtanh.pop %v870
  %v879 = vmul.f32 %v877, %v878
  %v880 = vadd.f32 %v879, %v768
  %v881 = vtanh.pop %v880
  %883 = vrot.lane.b32.xlu0 %v881, 64
  %v884 = vpop.permute.xlu0 %883
  %v886 = vmul.f32 %v877, %v884
  %888 = vrot.lane.b32.xlu0 %v886, 64
  %v889 = vpop.permute.xlu0 %888
  %vm891 = vcmask 516096
  %892 = vst.msk [vmem:[#allocation2 + $0x18] sm:$0x1] %vm891, %v889
  %893 = vst.msk [vmem:[#allocation3 + $0x18] sm:$0x1] %vm891, %v880
  %v894 = vld [vmem:[#allocation2] sm:$0xff]
  %v895 = vld [vmem:[#allocation2 + $0x8] sm:$0xff]
  %v896 = vld [vmem:[#allocation2 + $0x10] sm:$0xff]
  %v897 = vld [vmem:[#allocation2 + $0x18] sm:$0xff]
  %v898 = vld [vmem:[%s7] sm:$0xff]
  %v899 = vld [vmem:[%s7 + $0x8] sm:$0xff]
  %v900 = vld [vmem:[%s7 + $0x10] sm:$0xff]
  %v901 = vld [vmem:[%s7 + $0x18] sm:$0xff]
  %v902 = vld [vmem:[%s7 + $0x20] sm:$0xff]
  %v903 = vld [vmem:[%s7 + $0x28] sm:$0xff]
  %v904 = vld [vmem:[%s7 + $0x30] sm:$0xff]
  %v905 = vld [vmem:[%s7 + $0x38] sm:$0xff]
  %v906 = vld [vmem:[%s8] sm:$0x1]
  %v908 = vlaneseq
  %v909 = vshrl.u32 %v908, 7
  %v910 = vsub.s32 0, %v909
  %v911 = vrot.slane %v906, %v910
  %v914 = vsel %vm32, %v894, 0
  %v917 = vsel %vm32, %v895, 0
  %v920 = vsel %vm32, %v896, 0
  %v923 = vsel %vm32, %v897, 0
  %925 = vmatprep.subr.mxu0 0.0
  %926 = vmatpush1.msra.mxu0 %v898
  %927 = vmatprep.subr.mxu0 0.0
  %928 = vmatpush1.msra.mxu0 %v899
  %929 = vmatprep.subr.mxu0 0.0
  %930 = vmatpush1.msra.mxu0 %v900
  %931 = vmatprep.subr.mxu0 0.0
  %932 = vmatpush1.msra.mxu0 %v901
  %933 = vmatprep.subr.mxu0 0.0
  %934 = vmatpush1.msra.mxu0 %v902
  %935 = vmatprep.subr.mxu0 0.0
  %936 = vmatpush1.msra.mxu0 %v903
  %937 = vmatprep.subr.mxu0 0.0
  %938 = vmatpush1.msra.mxu0 %v904
  %939 = vmatprep.subr.mxu0 0.0
  %940 = vmatpush1.msra.mxu0 %v905
  %941 = vmatprep.subr.mxu0 0.0
  %942 = vmatpush1.msra.mxu0 0.0
  %943 = vmatprep.subr.mxu0 0.0
  %944 = vmatpush1.msra.mxu0 0.0
  %945 = vmatprep.subr.mxu0 0.0
  %946 = vmatpush1.msra.mxu0 0.0
  %947 = vmatprep.subr.mxu0 0.0
  %948 = vmatpush1.msra.mxu0 0.0
  %949 = vmatprep.subr.mxu0 0.0
  %950 = vmatpush1.msra.mxu0 0.0
  %951 = vmatprep.subr.mxu0 0.0
  %952 = vmatpush1.msra.mxu0 0.0
  %953 = vmatprep.subr.mxu0 0.0
  %954 = vmatpush1.msra.mxu0 0.0
  %955 = vmatprep.subr.mxu0 0.0
  %956 = vmatpush1.msra.mxu0 0.0
  %957 = vmatprep.subr.mxu0 0.0
  %958 = vmatpush1.msra.mxu0 0.0
  %959 = vmatprep.subr.mxu0 0.0
  %960 = vmatpush1.msra.mxu0 0.0
  %961 = vmatprep.subr.mxu0 0.0
  %962 = vmatpush1.msra.mxu0 0.0
  %963 = vmatprep.subr.mxu0 0.0
  %964 = vmatpush1.msra.mxu0 0.0
  %965 = vmatprep.subr.mxu0 0.0
  %966 = vmatpush1.msra.mxu0 0.0
  %967 = vmatprep.subr.mxu0 0.0
  %968 = vmatpush1.msra.mxu0 0.0
  %969 = vmatprep.subr.mxu0 0.0
  %970 = vmatpush1.msra.mxu0 0.0
  %971 = vmatprep.subr.mxu0 0.0
  %972 = vmatpush1.msra.mxu0 0.0
  %973 = vmatprep.subr.mxu0 0.0
  %974 = vmatpush1.msra.mxu0 0.0
  %975 = vmatprep.subr.mxu0 0.0
  %976 = vmatpush1.msra.mxu0 0.0
  %977 = vmatprep.subr.mxu0 0.0
  %978 = vmatpush1.msra.mxu0 0.0
  %979 = vmatprep.subr.mxu0 0.0
  %980 = vmatpush1.msra.mxu0 0.0
  %981 = vmatprep.subr.mxu0 0.0
  %982 = vmatpush1.msra.mxu0 0.0
  %983 = vmatprep.subr.mxu0 0.0
  %984 = vmatpush1.msra.mxu0 0.0
  %985 = vmatprep.subr.mxu0 0.0
  %986 = vmatpush1.msra.mxu0 0.0
  %987 = vmatprep.subr.mxu0 0.0
  %988 = vmatpush1.msra.mxu0 0.0
  %989 = vmatprep.mubr.f32.mxu0 0.0
  %990 = vmatmul.mubr.f32.gmra.mrb[0].mxu0 %v914
  %v991 = vpop.f32.mrb[0].mxu0
  %v992 = vadd.f32 %v911, %v991
  %v993 = vpop.f32.mrb[0].mxu0
  %994 = vmatprep.mubr.f32.mxu0 0.0
  %995 = vmatmul.mubr.f32.gmra.mrb[0].mxu0 %v917
  %v996 = vpop.f32.mrb[0].mxu0
  %v997 = vadd.f32 %v911, %v996
  %v998 = vpop.f32.mrb[0].mxu0
  %999 = vmatprep.mubr.f32.mxu0 0.0
  %1000 = vmatmul.mubr.f32.gmra.mrb[0].mxu0 %v920
  %v1001 = vpop.f32.mrb[0].mxu0
  %v1002 = vadd.f32 %v911, %v1001
  %v1003 = vpop.f32.mrb[0].mxu0
  %1004 = vmatprep.mubr.f32.mxu0 0.0
  %1005 = vmatmul.mubr.f32.gmra.mrb[0].mxu0 %v923
  %v1006 = vpop.f32.mrb[0].mxu0
  %v1007 = vadd.f32 %v911, %v1006
  %v1008 = vpop.f32.mrb[0].mxu0
  %1009 = vdwg.mxu0
  %1010 = vst [vmem:[%s9] sm:$0xff] %v992
  %1011 = vst [vmem:[%s9 + $0x8] sm:$0xff] %v997
  %1012 = vst [vmem:[%s9 + $0x10] sm:$0xff] %v1002
  %1013 = vst [vmem:[%s9 + $0x18] sm:$0xff] %v1007
  // Predicated region
  $region38: #{tree_lstm_forward.1} parent=0 // pred_check
    _
  $region39: #{tree_lstm_forward.1} parent=0 // pred_check_branch
    %1015 = sbr.rel (0) target = $region41
  $region40: #{tree_lstm_forward.1} parent=0 // pred_region
    _
  $region41: #{tree_lstm_forward.1} parent=0 // pred_fallthru
    _
  // Predicated region
  $region42: #{tree_lstm_forward.1} parent=0 // pred_check
    _
  $region43: #{tree_lstm_forward.1} parent=0 // pred_check_branch
    %1017 = sbr.rel (0) target = $region45
  $region44: #{tree_lstm_forward.1} parent=0 // pred_region
    _
  $region45: #{tree_lstm_forward.1} parent=0 // pred_fallthru
    _

</llo_original>
